<compile_context>
chip_gen: v6e
topology: v6e:2x2x1
jax: 0.10.0
libtpu: 0.0.40
codegen_flags: <defaults>
</compile_context>

<pallas_src>
import functools

import jax
import jax.numpy as jnp
from jax.experimental import pallas as pl
from jax.experimental.pallas import tpu as pltpu


def _circ_shift(a, k):
    """Circular shift of the rows (axis 0) of a 2-D tile.

    Uses an XLU sublane roll when the row count is a multiple of 8 (native
    sublane tiling); otherwise falls back to a small slice+concatenate.  The
    call sites below are written so the roll direction convention does not
    matter — only |k| and consistency between calls on the same tile.
    """
    t = a.shape[0]
    k = k % t
    if k == 0:
        return a
    if t % 8 == 0:
        return pltpu.roll(a, shift=k, axis=0)
    return jnp.concatenate([a[t - k:, :], a[:t - k, :]], axis=0)


def _charbonnier(d, eps):
    d = d.astype(jnp.float32)
    return jnp.sqrt(d * d + eps)


def _central_diff(a):
    """Central temporal difference with replicate boundary along axis 0.

    d[0]   = a[1]   - a[0]
    d[t]   = a[t+1] - 2 a[t] + a[t-1]   (1 <= t <= T-2)
    d[T-1] = a[T-2] - a[T-1]
    """
    t = a.shape[0]
    if t == 1:
        return jnp.zeros_like(a)
    # Interior rows from the two opposite circular shifts (direction agnostic).
    d = (_circ_shift(a, 1) + _circ_shift(a, -1)) - 2 * a
    # Replicate boundaries: overwrite the two boundary rows explicitly.
    row = jax.lax.broadcasted_iota(jnp.int32, (t, 1), 0)
    d = jnp.where(row == 0, a[1:2, :] - a[0:1, :], d)
    d = jnp.where(row == t - 1, a[t - 2:t - 1, :] - a[t - 1:t, :], d)
    return d


def _temporal_smooth_kernel(flow_ref, out_ref, acc_ref, *, mode, grad,
                            n_tiles, n_inner, last_cols, eps,
                            diff_in_input_dtype):
    # flow_ref : (T, tile_f) VMEM tile of the flattened flow (input dtype)
    # out_ref  : (1, 8, 128) per-core partial-sum block (f32)
    # acc_ref  : (1, tile_f) f32 lane accumulator (persists across grid steps)
    c = pl.program_id(0)                 # TensorCore split of the feature axis
    i = pl.program_id(1)                 # tile index within this core's range
    tile_idx = c * n_inner + i           # un-clamped global tile index
    valid = tile_idx < n_tiles           # False only for the clamped overflow
                                         # step of an uneven 2-core split

    @pl.when(i == 0)
    def _init():
        acc_ref[...] = jnp.zeros_like(acc_ref)

    x = flow_ref[...]
    if not (diff_in_input_dtype and x.dtype == jnp.bfloat16):
        x = x.astype(jnp.float32)        # bf16 stays bf16 in HBM; cast on-chip
    t = x.shape[0]
    tile_f = x.shape[1]

    if mode == "forward":
        # Circular stencil over all T rows + exact cancellation of the `grad`
        # wrapped rows (Charbonnier is even and the grad-2 stencil symmetric,
        # so this is independent of the roll direction and needs no row mask).
        if grad == 1:
            d = _circ_shift(x, 1) - x
            wrap = _charbonnier(x[0:1, :] - x[t - 1:t, :], eps)
        else:
            d = _circ_shift(x, 2) - 2 * _circ_shift(x, 1) + x
            wrap = (_charbonnier(x[0:1, :] - 2 * x[t - 1:t, :]
                                 + x[t - 2:t - 1, :], eps)
                    + _charbonnier(x[1:2, :] - 2 * x[0:1, :]
                                   + x[t - 1:t, :], eps))
        partial = jnp.sum(_charbonnier(d, eps), axis=0, keepdims=True) - wrap
    else:  # central (replicate boundaries)
        d = _central_diff(x)
        if grad == 2:
            d = _central_diff(d)
        partial = jnp.sum(_charbonnier(d, eps), axis=0, keepdims=True)

    if last_cols == tile_f:
        # F is a multiple of tile_f: no lane masking anywhere.
        @pl.when(valid)
        def _accumulate():
            acc_ref[...] += partial
    else:
        is_last = tile_idx == n_tiles - 1

        @pl.when(jnp.logical_and(valid, jnp.logical_not(is_last)))
        def _accumulate_full():
            acc_ref[...] += partial

        @pl.when(jnp.logical_and(valid, is_last))
        def _accumulate_ragged():
            lane = jax.lax.broadcasted_iota(jnp.int32, (1, tile_f), 1)
            acc_ref[...] += jnp.where(lane < last_cols, partial, 0.0)

    @pl.when(i == n_inner - 1)
    def _finalize():
        total = jnp.sum(acc_ref[...])    # single cross-lane reduce per core
        out_ref[...] = jnp.full(out_ref.shape, total, dtype=out_ref.dtype)


def _pick_tile_f(t, f, itemsize, ncores_hint=2):
    """Feature-tile width (multiple of 128 lanes).

    Sized from the real input itemsize against a ~28 MiB per-step working-set
    budget (2 pipeline buffers of the input tile + ~6 f32 stencil temps) so
    the footprint stays well inside v7x's 64 MiB/TC VMEM; capped at 32768
    lanes; prefers >= ~4 pipelined inner steps per core once there is enough
    data, but never below 512 lanes (>= 2 KiB f32 DMA rows).
    """
    groups = -(-f // 128)
    per_group = 128 * t * (2 * itemsize + 6 * 4)
    budget = 28 * 1024 * 1024
    cap = max(1, min(budget // per_group, 32768 // 128))
    prefer = max(4, -(-groups // (4 * ncores_hint)))
    return 128 * max(1, min(groups, cap, prefer))


def temporal_smooth(flow, mode="central", grad=1, tile_f=None,
                    diff_in_input_dtype=False):
    """Pallas implementation of TemporalSmooth(mode, grad)(flow).

    flow: [T, C, H, W].  Returns the scalar mean(sqrt(dt^2 + 1e-6)) / 2.
    """
    assert mode in ("forward", "central")
    assert grad in (1, 2)
    T, C, H, W = flow.shape
    F = C * H * W
    if mode == "forward" and T <= grad:
        raise ValueError(
            f"forward mode needs T > grad (got T={T}, grad={grad}): the "
            "reference reduces an empty tensor / divides by zero.")

    flow2d = flow.reshape(T, F)          # dtype-preserving layout plumbing
    itemsize = jnp.dtype(flow.dtype).itemsize

    if tile_f is None:
        tile_f = _pick_tile_f(T, F, itemsize)
    tile_f = max(128, (int(tile_f) // 128) * 128)

    n_tiles = -(-F // tile_f)
    # Always split across 2 TensorCores when there are >= 2 tiles (v7x
    # megacore; harmless / sequential on single-TC v5e/v6e).  Odd tile counts
    # get a ceil split; the index_map clamps the single overflow step and the
    # kernel skips its accumulation.
    ncores = 2 if n_tiles >= 2 else 1
    n_inner = -(-n_tiles // ncores)
    last_cols = F - (n_tiles - 1) * tile_f   # valid lanes in the last tile

    t_dt = T - grad if mode == "forward" else T
    scale = 0.5 / float(t_dt * F)        # precomputed; multiply, don't divide

    kernel = functools.partial(
        _temporal_smooth_kernel, mode=mode, grad=grad, n_tiles=n_tiles,
        n_inner=n_inner, last_cols=last_cols, eps=1e-6,
        diff_in_input_dtype=diff_in_input_dtype)

    # Scoped-VMEM limit derived from the real per-step footprint (2 pipeline
    # buffers + ~6 f32 temporaries + accumulator), capped at 40 MiB for v7x.
    footprint = tile_f * T * (2 * itemsize + 6 * 4) + tile_f * 4 + 8 * 128 * 4
    vmem_limit = int(min(40 * 1024 * 1024, max(16 * 1024 * 1024, 2 * footprint)))

    cost = pl.CostEstimate(
        flops=8 * T * F,
        transcendentals=T * F,
        bytes_accessed=T * F * itemsize + ncores * 8 * 128 * 4)

    out = pl.pallas_call(
        kernel,
        out_shape=jax.ShapeDtypeStruct((ncores, 8, 128), jnp.float32),
        grid_spec=pltpu.PrefetchScalarGridSpec(
            num_scalar_prefetch=0,
            grid=(ncores, n_inner),
            in_specs=[pl.BlockSpec(
                (T, tile_f),
                lambda c, i: (0, jnp.minimum(c * n_inner + i, n_tiles - 1)))],
            out_specs=pl.BlockSpec((1, 8, 128), lambda c, i: (c, 0, 0)),
            scratch_shapes=[pltpu.VMEM((1, tile_f), jnp.float32)],
        ),
        compiler_params=pltpu.CompilerParams(
            dimension_semantics=("parallel", "arbitrary"),
            vmem_limit_bytes=vmem_limit,
        ),
        cost_estimate=cost,
    )(flow2d)

    # One scalar per core (each (8,128) block is a broadcast of that core's sum).
    return jnp.sum(out[:, 0, 0]) * scale


def _reference(flow, mode, grad):
    """Pure-JAX reference matching the PyTorch semantics exactly."""
    flow = flow.astype(jnp.float32)

    def fwd(a):
        return a[1:] - a[:-1]

    def cen(a):
        prev = jnp.concatenate([a[:1], a[:-1]], axis=0)
        nxt = jnp.concatenate([a[1:], a[-1:]], axis=0)
        return nxt - 2.0 * a + prev

    d = fwd if mode == "forward" else cen
    dt = d(flow)
    if grad == 2:
        dt = d(dt)
    return jnp.mean(jnp.sqrt(dt * dt + 1e-6)) / 2.0


if __name__ == "__main__":
    # TemporalSmooth has no learnable parameters, so nothing to initialize.
    T, C, H, W = 8, 4, 16, 16
    flow = jax.random.normal(jax.random.PRNGKey(0), (T, C, H, W),
                             dtype=jnp.float32)

    failures = []

    def check(x, mode, grad, tile_f=None, tag=None, rtol=1e-5, atol=1e-6):
        got = jax.block_until_ready(
            temporal_smooth(x, mode=mode, grad=grad, tile_f=tile_f))
        want = jax.block_until_ready(_reference(x, mode, grad))
        if not jnp.allclose(got, want, rtol=rtol, atol=atol):
            failures.append((tag or f"mode={mode} grad={grad} tile={tile_f}",
                             float(got), float(want)))

    # All mode / grad combinations at the default tiling (2 tiles, 2-core split).
    for mode in ("forward", "central"):
        for grad in (1, 2):
            check(flow, mode, grad)

    # Multi-step accumulator path (8 tiles, 4 inner steps per core).
    check(flow, "central", 2, tile_f=128, tag="multi-step")

    # Odd tile count (uneven 2-core split with a clamped overflow step) plus
    # ragged last tile lane masking (F = 1152).
    flow2 = jax.random.normal(jax.random.PRNGKey(1), (8, 4, 16, 18),
                              dtype=jnp.float32)
    check(flow2, "forward", 2, tile_f=256, tag="odd+ragged")
    check(flow2, "central", 1, tag="default-ragged")

    # bf16 input: DMA'd as bf16 (half the HBM bytes), cast to f32 in-kernel.
    flow_bf16 = flow.astype(jnp.bfloat16)
    check(flow_bf16, "central", 2, tag="bf16-input", rtol=1e-4, atol=1e-5)

    if failures:
        for tag, g, w in failures:
            print(f"MISMATCH {tag}: got {g} want {w}")
    else:
        print("KERNEL_OK")
</pallas_src>

<mosaic_0001>
module attributes {stable_mosaic.version = 11 : i64} {
  func.func @_temporal_smooth_kernel(%arg0: i32, %arg1: i32, %arg2: memref<8x512xf32, #tpu.memory_space<vmem>>, %arg3: memref<1x8x128xf32, #tpu.memory_space<vmem>>, %arg4: memref<1x512xf32, #tpu.memory_space<vmem>>) attributes {dimension_semantics = [#tpu.dimension_semantics<parallel>, #tpu.dimension_semantics<arbitrary>], iteration_bounds = array<i64: 2, 1>, scalar_prefetch = 0 : i64, scratch_operands = 1 : i64, tpu.core_type = #tpu.core_type<tc>, window_params = [{transform_indices = @transform_0, window_bounds = array<i64: 8, 512>}, {transform_indices = @transform_1, window_bounds = array<i64: 1, 8, 128>}]} {
    %c1_i32 = arith.constant 1 : i32
    %0 = arith.muli %arg0, %c1_i32 : i32
    %1 = arith.addi %0, %arg1 : i32
    %c2_i32 = arith.constant 2 : i32
    %2 = arith.cmpi slt, %1, %c2_i32 : i32
    %c0_i32 = arith.constant 0 : i32
    %3 = arith.cmpi eq, %arg1, %c0_i32 : i32
    %4 = arith.extui %3 : i1 to i32
    %c0_i32_0 = arith.constant 0 : i32
    %5 = arith.cmpi ne, %4, %c0_i32_0 : i32
    scf.if %5 {
      %cst_8 = arith.constant 0.000000e+00 : f32
      %28 = vector.broadcast %cst_8 : f32 to vector<1x512xf32>
      %c0_9 = arith.constant 0 : index
      %c0_10 = arith.constant 0 : index
      %29 = vector.load %arg4[%c0_9, %c0_10] : memref<1x512xf32, #tpu.memory_space<vmem>>, vector<1x512xf32>
      tpu.vector_store %arg4[%c0_9, %c0_10], %28 {strides = array<i32>} : memref<1x512xf32, #tpu.memory_space<vmem>>, vector<1x512xf32>,
    } else {
    }
    %c0 = arith.constant 0 : index
    %c0_1 = arith.constant 0 : index
    %6 = vector.load %arg2[%c0, %c0_1] : memref<8x512xf32, #tpu.memory_space<vmem>>, vector<8x512xf32>
    %c1_i32_2 = arith.constant 1 : i32
    %7 = tpu.dynamic_rotate %6 by %c1_i32_2 dim 0 : vector<8x512xf32>, i32 -> vector<8x512xf32>
    %8 = arith.subf %7, %6 : vector<8x512xf32>
    %9 = vector.extract_strided_slice %6 {offsets = [0, 0], sizes = [1, 512], strides = [1, 1]} : vector<8x512xf32> to vector<1x512xf32>
    %10 = vector.extract_strided_slice %6 {offsets = [7, 0], sizes = [1, 512], strides = [1, 1]} : vector<8x512xf32> to vector<1x512xf32>
    %11 = arith.subf %9, %10 : vector<1x512xf32>
    %12 = arith.mulf %11, %11 : vector<1x512xf32>
    %cst = arith.constant 9.99999997E-7 : f32
    %13 = vector.broadcast %cst : f32 to vector<1x512xf32>
    %14 = arith.addf %12, %13 : vector<1x512xf32>
    %15 = math.sqrt %14 : vector<1x512xf32>
    %16 = arith.mulf %8, %8 : vector<8x512xf32>
    %cst_3 = arith.constant 9.99999997E-7 : f32
    %17 = vector.broadcast %cst_3 : f32 to vector<8x512xf32>
    %18 = arith.addf %16, %17 : vector<8x512xf32>
    %19 = math.sqrt %18 : vector<8x512xf32>
    %cst_4 = arith.constant dense<0.000000e+00> : vector<512xf32>
    %20 = vector.multi_reduction <add>, %19, %cst_4 [0] : vector<8x512xf32> to vector<512xf32>
    %21 = vector.shape_cast %20 : vector<512xf32> to vector<1x512xf32>
    %22 = arith.subf %21, %15 : vector<1x512xf32>
    %23 = arith.extui %2 : i1 to i32
    %c0_i32_5 = arith.constant 0 : i32
    %24 = arith.cmpi ne, %23, %c0_i32_5 : i32
    scf.if %24 {
      %c0_8 = arith.constant 0 : index
      %c0_9 = arith.constant 0 : index
      %28 = vector.load %arg4[%c0_8, %c0_9] : memref<1x512xf32, #tpu.memory_space<vmem>>, vector<1x512xf32>
      %29 = arith.addf %28, %22 : vector<1x512xf32>
      %c0_10 = arith.constant 0 : index
      %c0_11 = arith.constant 0 : index
      %30 = vector.load %arg4[%c0_10, %c0_11] : memref<1x512xf32, #tpu.memory_space<vmem>>, vector<1x512xf32>
      tpu.vector_store %arg4[%c0_10, %c0_11], %29 {strides = array<i32>} : memref<1x512xf32, #tpu.memory_space<vmem>>, vector<1x512xf32>,
    } else {
    }
    %c0_i32_6 = arith.constant 0 : i32
    %25 = arith.cmpi eq, %arg1, %c0_i32_6 : i32
    %26 = arith.extui %25 : i1 to i32
    %c0_i32_7 = arith.constant 0 : i32
    %27 = arith.cmpi ne, %26, %c0_i32_7 : i32
    scf.if %27 {
      %c0_8 = arith.constant 0 : index
      %c0_9 = arith.constant 0 : index
      %28 = vector.load %arg4[%c0_8, %c0_9] : memref<1x512xf32, #tpu.memory_space<vmem>>, vector<1x512xf32>
      %29 = vector.shape_cast %28 : vector<1x512xf32> to vector<1x1x512xf32>
      %cst_10 = arith.constant dense<0.000000e+00> : vector<1xf32>
      %30 = vector.multi_reduction <add>, %29, %cst_10 [1, 2] : vector<1x1x512xf32> to vector<1xf32>
      %31 = vector.shape_cast %30 : vector<1xf32> to vector<1x1x1xf32>
      %32 = vector.extract %31[0, 0, 0] : f32 from vector<1x1x1xf32>
      %33 = vector.broadcast %32 : f32 to vector<1x8x128xf32>
      %c0_11 = arith.constant 0 : index
      %c0_12 = arith.constant 0 : index
      %c0_13 = arith.constant 0 : index
      %34 = vector.load %arg3[%c0_11, %c0_12, %c0_13] : memref<1x8x128xf32, #tpu.memory_space<vmem>>, vector<1x8x128xf32>
      tpu.vector_store %arg3[%c0_11, %c0_12, %c0_13], %33 {strides = array<i32>} : memref<1x8x128xf32, #tpu.memory_space<vmem>>, vector<1x8x128xf32>,
    } else {
    }
    return
  }
  func.func @transform_0(%arg0: i32, %arg1: i32) -> (i32, i32) {
    %c1_i32 = arith.constant 1 : i32
    %0 = arith.muli %arg0, %c1_i32 : i32
    %1 = arith.addi %0, %arg1 : i32
    %c1_i32_0 = arith.constant 1 : i32
    %2 = arith.minsi %1, %c1_i32_0 : i32
    %c0_i32 = arith.constant 0 : i32
    %c0_i32_1 = arith.constant 0 : i32
    return %c0_i32, %2 : i32, i32
  }
  func.func @transform_1(%arg0: i32, %arg1: i32) -> (i32, i32, i32) {
    %c0_i32 = arith.constant 0 : i32
    %c0_i32_0 = arith.constant 0 : i32
    %c0_i32_1 = arith.constant 0 : i32
    return %arg0, %c0_i32, %c0_i32_0 : i32, i32, i32
  }
}

</mosaic_0001>

<llo_original>
// kernel: tpu_custom_call.1
$region0: #{tpu_custom_call.1}
  #allocation0 [shape = 'u32[]', space=smem, size = 0x4, offset = 0x4, fixed_abs, tag = 'smem constant byte address 0x4 - core index']
  #allocation1 [shape = 'u32[144,128]{1,0:T(1,128)}', space=vmem, size = 0x12000, scoped, tag = 'internal scratch']
  #allocation2 [shape = 'f32[1,512]{1,0:T(1,128)}', space=vmem, size = 0x800, scoped, tag = 'scratch operand']
  %s0 = inlined_call_operand.hbm [shape: f32[8,1024], index: 0, kind: input, shape index: {}]
  %s1 = inlined_call_operand.hbm [shape: f32[2,8,128], index: 1, kind: output, shape index: {}]
  %s2 = sld [smem:[#allocation0]]
  $region53: #{tpu_custom_call.1} parent=0
    _
  %s4 = ssub.s32 1, %s2
  %s5 = scalar_select 0, %s4, %s2
  $region1: #{tpu_custom_call.1} parent=0
    #allocation3 [shape = 'u8[32768]{0}', space=vmem, size = 0x8000, scoped, tag = 'input window, operand 0']
    #allocation4 [shape = 's32[2]{0}', space=sflag, size = 0x8, scoped, tag = 'scoped memory for tpu_custom_call.1']
    #allocation5 [shape = 's32[2]{0}', space=sflag, size = 0x8, scoped, tag = 'scoped memory for tpu_custom_call.1']
    #allocation6 [shape = 'u8[8192]{0}', space=vmem, size = 0x2000, scoped, tag = 'output window, operand 0']
    %6 = vsyncpa [#allocation4], 0
    %s7 = scalar_lea.sflag [#allocation4], 1
    %8 = vsyncpa %s7, 0
    %9 = vsyncpa [#allocation5], 0
    %s10 = scalar_lea.sflag [#allocation5], 1
    %11 = vsyncpa %s10, 0
    loop: start=0, step=1, limit=4
    $region2: #{tpu_custom_call.1} parent=1 // loop_pre_header
      _
    $region3: #{tpu_custom_call.1} parent=1 // loop_header
      %s13 = sphi 0, %s17
      %p14 = scmp.ge.s32.totalorder %s13, 4
      %s20 = sphi 0, %s32
      %s21 = sphi 0, %s28
      %s22 = sphi 0, %s20
      %s23 = sphi 0, %s21
      %s24 = sphi 0, %s22
      %s25 = sphi 0, %s23
      %s41 = sphi 0, %s43
      %s44 = sphi 0, %s41
      %s45 = sphi 0, %s44
      %s61 = sphi 0, %s45
      %s67 = sphi 0, %s69
      %s70 = sphi 0, %s67
      %s71 = sphi 0, %s70
      %s87 = sphi 0, %s71
    $region4: #{tpu_custom_call.1} parent=1 // loop_header_branch
      %16 = sbr.rel (%p14) target = $region8
    $region5: #{tpu_custom_call.1} parent=1 // loop_body
      %s18 = ssub.s32 %s13, 1
      %s19 = ssub.s32 %s13, 2
      %s26 = sadd.s32 1, %s21
      %p27 = scmp.ge.s32.totalorder %s26, 1
      %s28 = scalar_select %p27, 0, %s26
      %s29 = sadd.s32 1, %s20
      %s30 = scalar_select %p27, %s29, %s20
      %p31 = scmp.ge.s32.totalorder %s30, 2
      %s32 = scalar_select %p31, 0, %s30
      %s33 = sadd.s32 %s20, %s21
      %p34 = scmp.lt.s32.totalorder %s33, 1
      %s35 = scalar_select %p34, %s33, 1
      %s36 = sadd.s32 %s32, %s28
      %p37 = scmp.lt.s32.totalorder %s36, 1
      %s38 = scalar_select %p37, %s36, 1
      %s39 = ssub.s32 %s35, %s38
      %p40 = scmp.eq.s32.totalorder %s39, 0
      %s42 = sadd.s32 %s41, 1
      %s43 = scalar_select %p40, %s41, %s42
      %p46 = pneg %p40
      %p47 = scmp.eq.s32.totalorder %s13, 1
      %p48 = por %p46, %p47
      %p49 = scmp.ne.s32.totalorder %s41, %s44
      %p50 = scmp.eq.s32.totalorder %s13, 0
      %p51 = por %p49, %p50
      %p52 = scmp.ne.s32.totalorder %s41, %s44
      %p53 = scmp.eq.s32.totalorder %s18, 1
      %p54 = por %p52, %p53
      %p55 = scmp.ne.s32.totalorder %s44, %s45
      %p56 = scmp.eq.s32.totalorder %s18, 0
      %p57 = por %p55, %p56
      %p58 = scmp.ne.s32.totalorder %s44, %s45
      %p59 = scmp.eq.s32.totalorder %s19, 1
      %p60 = por %p58, %p59
      %p62 = scmp.ne.s32.totalorder %s45, %s61
      %p63 = scmp.eq.s32.totalorder %s19, 0
      %p64 = por %p62, %p63
      %s65 = ssub.s32 %s20, %s32
      %p66 = scmp.eq.s32.totalorder %s65, 0
      %s68 = sadd.s32 %s67, 1
      %s69 = scalar_select %p66, %s67, %s68
      %p72 = pneg %p66
      %p73 = scmp.eq.s32.totalorder %s13, 1
      %p74 = por %p72, %p73
      %p75 = scmp.ne.s32.totalorder %s67, %s70
      %p76 = scmp.eq.s32.totalorder %s13, 0
      %p77 = por %p75, %p76
      %p78 = scmp.ne.s32.totalorder %s67, %s70
      %p79 = scmp.eq.s32.totalorder %s18, 1
      %p80 = por %p78, %p79
      %p81 = scmp.ne.s32.totalorder %s70, %s71
      %p82 = scmp.eq.s32.totalorder %s18, 0
      %p83 = por %p81, %p82
      %p84 = scmp.ne.s32.totalorder %s70, %s71
      %p85 = scmp.eq.s32.totalorder %s19, 1
      %p86 = por %p84, %p85
      %p88 = scmp.ne.s32.totalorder %s71, %s87
      %p89 = scmp.eq.s32.totalorder %s19, 0
      %p90 = por %p88, %p89
      %p91 = scmp.le.s32.totalorder 1, %s13
      %p92 = scmp.lt.s32.totalorder %s13, 3
      %p93 = pnand %p91, %p92
      %p94 = pneg %p93
      // Predicated region
      $region9: #{tpu_custom_call.1} parent=5 // pred_check
        _
      $region10: #{tpu_custom_call.1} parent=5 // pred_check_branch
        %96 = sbr.rel (%p93) target = $region12
      $region11: #{tpu_custom_call.1} parent=5 // pred_region
        %s97 = ssub.s32 %s13, 1
      $region12: #{tpu_custom_call.1} parent=5 // pred_fallthru
        _
      %p98 = scmp.lt.s32.totalorder %s13, 2
      // Predicated region
      $region13: #{tpu_custom_call.1} parent=5 // pred_check
        %p99 = pneg %p98
      $region14: #{tpu_custom_call.1} parent=5 // pred_check_branch
        %101 = sbr.rel (%p99) target = $region16
      $region15: #{tpu_custom_call.1} parent=5 // pred_region
        // Predicated region
        $region17: #{tpu_custom_call.1} parent=15 // pred_check
          %p102 = pneg %p51
        $region18: #{tpu_custom_call.1} parent=15 // pred_check_branch
          %104 = sbr.rel (%p102) target = $region20
        $region19: #{tpu_custom_call.1} parent=15 // pred_region
          %s105 = sand.u32 %s41, 1
          %s106 = scalar_lea.sflag [#allocation4], %s105
          %s107 = sand.u32 %s41, 1
          %s108 = smul.addr %s107, 32
          %s109 = scalar_lea.vmem [#allocation3], %s108
          %s110 = sadd.s32 %s20, %s21
          %p111 = scmp.lt.s32.totalorder %s110, 1
          %s112 = scalar_select %p111, %s110, 1
          %s113 = smul.u32 4, %s112
          %s115 = ssub.s32 512, 512
          %116 = vsyncadd %s106, %s115
          %s117 = smul.addr %s113, 128
          %s118 = scalar_lea.hbm %s0, %s117
          %s120 = sshll.u32 %s109, 4
          %s121 = int_to_ptr.vmem [resolvable:$true] %s120
          %123 = dma.hbm_to_vmem [thread:$0]  %s118, 512, %s121, %s106
        $region20: #{tpu_custom_call.1} parent=15 // pred_fallthru
          _
      $region16: #{tpu_custom_call.1} parent=5 // pred_fallthru
        _
      %p124 = scmp.le.s32.totalorder 1, %s13
      %p125 = scmp.lt.s32.totalorder %s13, 3
      %p126 = pnand %p124, %p125
      %p127 = pneg %p126
      // Predicated region
      $region21: #{tpu_custom_call.1} parent=5 // pred_check
        _
      $region22: #{tpu_custom_call.1} parent=5 // pred_check_branch
        %129 = sbr.rel (%p126) target = $region24
      $region23: #{tpu_custom_call.1} parent=5 // pred_region
        %s130 = ssub.s32 %s13, 1
        %s131 = sand.u32 %s44, 1
        %s132 = scalar_lea.sflag [#allocation4], %s131
        %s133 = sand.u32 %s44, 1
        %s134 = smul.addr %s133, 32
        %s135 = scalar_lea.vmem [#allocation3], %s134
        // Predicated region
        $region25: #{tpu_custom_call.1} parent=23 // pred_check
          %p136 = pneg %p57
        $region26: #{tpu_custom_call.1} parent=23 // pred_check_branch
          %138 = sbr.rel (%p136) target = $region28
        $region27: #{tpu_custom_call.1} parent=23 // pred_region
          %139 = dma.done %s132, 512
        $region28: #{tpu_custom_call.1} parent=23 // pred_fallthru
          _
        %s140 = sand.u32 %s44, 1
        %s141 = scalar_lea.sflag [#allocation4], %s140
        %s142 = sand.u32 %s44, 1
        %s143 = smul.addr %s142, 32
        %s144 = scalar_lea.vmem [#allocation3], %s143
        %p145 = pneg %p57
        %p146 = pneg %p54
        %p147 = pneg %p83
        %p148 = pneg %p80
        %s149 = sand.u32 %s70, 1
        %s150 = scalar_lea.sflag [#allocation5], %s149
        %s151 = sand.u32 %s70, 1
        %s152 = smul.addr %s151, 8
        %s153 = scalar_lea.vmem [#allocation6], %s152
        %s154 = sadd.s32 %s22, %s23
        %p155 = scmp.lt.s32.totalorder %s154, 1
        %s156 = scalar_select %p155, %s154, 1
        %s157 = smul.u32 4, %s156
        %s158 = sadd.s32 %s22, %s23
        %p159 = scmp.lt.s32.totalorder %s158, 2
        %p160 = scmp.eq.s32.totalorder %s23, 0
        // Predicated region
        $region29: #{tpu_custom_call.1} parent=23 // pred_check
          %p161 = pneg %p160
        $region30: #{tpu_custom_call.1} parent=23 // pred_check_branch
          %163 = sbr.rel (%p161) target = $region32
        $region31: #{tpu_custom_call.1} parent=23 // pred_region
          %v164 = vlaneseq
          %vm165 = vcmp.ge.s32.totalorder %v164, 0
          %vm166 = vcmp.lt.s32.totalorder %v164, 512
          %vm167 = vmand %vm165, %vm166
          %168 = vst.msk [vmem:[#allocation2] sm:$0xf] %vm167, 0.0
        $region32: #{tpu_custom_call.1} parent=23 // pred_fallthru
          _
        %v169 = vld [vmem:[%s135] sm:$0xff]
        %v170 = vld [vmem:[%s135 + $0x8] sm:$0xff]
        %v171 = vld [vmem:[%s135 + $0x10] sm:$0xff]
        %v172 = vld [vmem:[%s135 + $0x18] sm:$0xff]
        %v173 = vrot.slane %v169, 7
        %v174 = vrot.slane %v170, 7
        %v175 = vrot.slane %v171, 7
        %v176 = vrot.slane %v172, 7
        %v177 = vsub.f32 %v173, %v169
        %v178 = vsub.f32 %v174, %v170
        %v179 = vsub.f32 %v175, %v171
        %v180 = vsub.f32 %v176, %v172
        %v185 = vrot.slane %v169, 7
        %v186 = vrot.slane %v170, 7
        %v187 = vrot.slane %v171, 7
        %v188 = vrot.slane %v172, 7
        %v193 = vsub.f32 %v169, %v185
        %v194 = vsub.f32 %v170, %v186
        %v195 = vsub.f32 %v171, %v187
        %v196 = vsub.f32 %v172, %v188
        %v197 = vmul.f32 %v193, %v193
        %v198 = vmul.f32 %v194, %v194
        %v199 = vmul.f32 %v195, %v195
        %v200 = vmul.f32 %v196, %v196
        %v201 = vadd.f32 %v197, 1e-06
        %v202 = vadd.f32 %v198, 1e-06
        %v203 = vadd.f32 %v199, 1e-06
        %v204 = vadd.f32 %v200, 1e-06
        %v205 = vrsqrt.pop %v201
        %v206 = vmul.f32 %v201, %v205
        %vm207 = vcmp.eq.f32.partialorder %v201, inf
        %v208 = vsel %vm207, %v201, %v206
        %vm209 = vcmp.eq.f32.partialorder %v201, 0.0
        %v210 = vand.u32 %v201, 2147483648
        %v211 = vsel %vm209, %v210, %v208
        %v212 = vrsqrt.pop %v202
        %v213 = vmul.f32 %v202, %v212
        %vm214 = vcmp.eq.f32.partialorder %v202, inf
        %v215 = vsel %vm214, %v202, %v213
        %vm216 = vcmp.eq.f32.partialorder %v202, 0.0
        %v217 = vand.u32 %v202, 2147483648
        %v218 = vsel %vm216, %v217, %v215
        %v219 = vrsqrt.pop %v203
        %v220 = vmul.f32 %v203, %v219
        %vm221 = vcmp.eq.f32.partialorder %v203, inf
        %v222 = vsel %vm221, %v203, %v220
        %vm223 = vcmp.eq.f32.partialorder %v203, 0.0
        %v224 = vand.u32 %v203, 2147483648
        %v225 = vsel %vm223, %v224, %v222
        %v226 = vrsqrt.pop %v204
        %v227 = vmul.f32 %v204, %v226
        %vm228 = vcmp.eq.f32.partialorder %v204, inf
        %v229 = vsel %vm228, %v204, %v227
        %vm230 = vcmp.eq.f32.partialorder %v204, 0.0
        %v231 = vand.u32 %v204, 2147483648
        %v232 = vsel %vm230, %v231, %v229
        %v233 = vmul.f32 %v177, %v177
        %v234 = vmul.f32 %v178, %v178
        %v235 = vmul.f32 %v179, %v179
        %v236 = vmul.f32 %v180, %v180
        %v237 = vadd.f32 %v233, 1e-06
        %v238 = vadd.f32 %v234, 1e-06
        %v239 = vadd.f32 %v235, 1e-06
        %v240 = vadd.f32 %v236, 1e-06
        %v241 = vrsqrt.pop %v237
        %v242 = vmul.f32 %v237, %v241
        %vm243 = vcmp.eq.f32.partialorder %v237, inf
        %v244 = vsel %vm243, %v237, %v242
        %vm245 = vcmp.eq.f32.partialorder %v237, 0.0
        %v246 = vand.u32 %v237, 2147483648
        %v247 = vsel %vm245, %v246, %v244
        %v248 = vrsqrt.pop %v238
        %v249 = vmul.f32 %v238, %v248
        %vm250 = vcmp.eq.f32.partialorder %v238, inf
        %v251 = vsel %vm250, %v238, %v249
        %vm252 = vcmp.eq.f32.partialorder %v238, 0.0
        %v253 = vand.u32 %v238, 2147483648
        %v254 = vsel %vm252, %v253, %v251
        %v255 = vrsqrt.pop %v239
        %v256 = vmul.f32 %v239, %v255
        %vm257 = vcmp.eq.f32.partialorder %v239, inf
        %v258 = vsel %vm257, %v239, %v256
        %vm259 = vcmp.eq.f32.partialorder %v239, 0.0
        %v260 = vand.u32 %v239, 2147483648
        %v261 = vsel %vm259, %v260, %v258
        %v262 = vrsqrt.pop %v240
        %v263 = vmul.f32 %v240, %v262
        %vm264 = vcmp.eq.f32.partialorder %v240, inf
        %v265 = vsel %vm264, %v240, %v263
        %vm266 = vcmp.eq.f32.partialorder %v240, 0.0
        %v267 = vand.u32 %v240, 2147483648
        %v268 = vsel %vm266, %v267, %v265
        %v269 = vrot.slane %v247, 4
        %v270 = vadd.f32 %v247, %v269
        %v271 = vrot.slane %v270, 2
        %v272 = vadd.f32 %v270, %v271
        %v273 = vrot.slane %v272, 1
        %v274 = vadd.f32 %v272, %v273
        %v275 = vrot.slane %v254, 4
        %v276 = vadd.f32 %v254, %v275
        %v277 = vrot.slane %v276, 2
        %v278 = vadd.f32 %v276, %v277
        %v279 = vrot.slane %v278, 1
        %v280 = vadd.f32 %v278, %v279
        %v281 = vrot.slane %v261, 4
        %v282 = vadd.f32 %v261, %v281
        %v283 = vrot.slane %v282, 2
        %v284 = vadd.f32 %v282, %v283
        %v285 = vrot.slane %v284, 1
        %v286 = vadd.f32 %v284, %v285
        %v287 = vrot.slane %v268, 4
        %v288 = vadd.f32 %v268, %v287
        %v289 = vrot.slane %v288, 2
        %v290 = vadd.f32 %v288, %v289
        %v291 = vrot.slane %v290, 1
        %v292 = vadd.f32 %v290, %v291
        %v293 = vsub.f32 %v274, %v211
        %v294 = vsub.f32 %v280, %v218
        %v295 = vsub.f32 %v286, %v225
        %v296 = vsub.f32 %v292, %v232
        // Predicated region
        $region33: #{tpu_custom_call.1} parent=23 // pred_check
          %p297 = pneg %p159
        $region34: #{tpu_custom_call.1} parent=23 // pred_check_branch
          %299 = sbr.rel (%p297) target = $region36
        $region35: #{tpu_custom_call.1} parent=23 // pred_region
          %v300 = vld [vmem:[#allocation2] sm:$0xf]
          %v305 = vcombine.low %v293, %v294
          %v306 = vcombine.low %v295, %v296
          %v308 = vunpack.c.l.s4 1966171168
          %v309 = vunpack.c.0.s8 %v308
          %v310 = vlaneseq
          %v311 = vshrl.u32 %v310, 7
          %v312 = vsub.s32 %v309, %v311
          %v313 = vrot.slane %v305, %v312
          %v315 = vunpack.c.l.s4 1966171168
          %v316 = vunpack.c.0.s8 %v315
          %v317 = vlaneseq
          %v318 = vshrl.u32 %v317, 7
          %v319 = vsub.s32 %v316, %v318
          %v320 = vrot.slane %v306, %v319
          %v321 = vcombine.low %v313, %v320
          %v323 = vunpack.c.l.s4 1966171168
          %v324 = vunpack.c.0.s8 %v323
          %v325 = vlaneseq
          %v326 = vshrl.u32 %v325, 7
          %v327 = vsub.s32 %v324, %v326
          %v328 = vrot.slane %v321, %v327
          %v330 = vadd.f32 %v300, %v328
          %v331 = vlaneseq
          %vm332 = vcmp.ge.s32.totalorder %v331, 0
          %vm333 = vcmp.lt.s32.totalorder %v331, 512
          %vm334 = vmand %vm332, %vm333
          %335 = vst.msk [vmem:[#allocation2] sm:$0xf] %vm334, %v330
        $region36: #{tpu_custom_call.1} parent=23 // pred_fallthru
          _
        // Predicated region
        $region37: #{tpu_custom_call.1} parent=23 // pred_check
          %p336 = pneg %p160
        $region38: #{tpu_custom_call.1} parent=23 // pred_check_branch
          %338 = sbr.rel (%p336) target = $region40
        $region39: #{tpu_custom_call.1} parent=23 // pred_region
          %v339 = vld [vmem:[#allocation2] sm:$0xf]
          %v341 = vlaneseq
          %v342 = vshrl.u32 %v341, 7
          %v343 = vsub.s32 0, %v342
          %v344 = vrot.slane %v339, %v343
          %v345 = vlaneseq
          %v346 = vshrl.u32 %v345, 7
          %v347 = vsub.s32 1, %v346
          %v348 = vrot.slane %v339, %v347
          %v349 = vlaneseq
          %v350 = vshrl.u32 %v349, 7
          %v351 = vsub.s32 2, %v350
          %v352 = vrot.slane %v339, %v351
          %v353 = vlaneseq
          %v354 = vshrl.u32 %v353, 7
          %v355 = vsub.s32 3, %v354
          %v356 = vrot.slane %v339, %v355
          %vm361 = vcmask 1040384
          %v362 = vsel %vm361, %v344, 0.0
          %v363 = vsel %vm361, %v348, 0.0
          %v364 = vadd.f32 %v362, %v363
          %v365 = vsel %vm361, %v352, 0.0
          %v366 = vadd.f32 %v364, %v365
          %v367 = vsel %vm361, %v356, 0.0
          %v368 = vadd.f32 %v366, %v367
          %369 = vadd.xlane.f32.xlu0 %v368
          %v370 = vpop.xlane.xlu0 %369
          %v371 = vrot.slane %v370, 4
          %v372 = vadd.f32 %v370, %v371
          %v373 = vrot.slane %v372, 2
          %v374 = vadd.f32 %v372, %v373
          %v375 = vrot.slane %v374, 1
          %v376 = vadd.f32 %v374, %v375
          %s377 = vtos %v376
          %v378 = vstv %s377
          %379 = vst [vmem:[%s153] sm:$0xff] %v378
        $region40: #{tpu_custom_call.1} parent=23 // pred_fallthru
          _
        %s380 = sand.u32 %s70, 1
        %s381 = scalar_lea.sflag [#allocation5], %s380
        %s382 = sand.u32 %s70, 1
        %s383 = smul.addr %s382, 8
        %s384 = scalar_lea.vmem [#allocation6], %s383
        // Predicated region
        $region41: #{tpu_custom_call.1} parent=23 // pred_check
          %p385 = pneg %p80
        $region42: #{tpu_custom_call.1} parent=23 // pred_check_branch
          %387 = sbr.rel (%p385) target = $region44
        $region43: #{tpu_custom_call.1} parent=23 // pred_region
          %s389 = ssub.s32 128, 128
          %390 = vsyncadd %s381, %s389
          %s391 = smul.addr %s22, 128
          %s392 = scalar_lea.hbm %s1, %s391
          %s394 = sshll.u32 %s384, 4
          %s395 = int_to_ptr.vmem [resolvable:$true] %s394
          %397 = dma.vmem_to_hbm [thread:$0]  %s395, 128, %s392, %s381
        $region44: #{tpu_custom_call.1} parent=23 // pred_fallthru
          _
      $region24: #{tpu_custom_call.1} parent=5 // pred_fallthru
        _
      %p398 = scmp.le.s32.totalorder 2, %s13
      // Predicated region
      $region45: #{tpu_custom_call.1} parent=5 // pred_check
        %p399 = pneg %p398
      $region46: #{tpu_custom_call.1} parent=5 // pred_check_branch
        %401 = sbr.rel (%p399) target = $region48
      $region47: #{tpu_custom_call.1} parent=5 // pred_region
        %s402 = ssub.s32 %s13, 2
        // Predicated region
        $region49: #{tpu_custom_call.1} parent=47 // pred_check
          %p403 = pneg %p86
        $region50: #{tpu_custom_call.1} parent=47 // pred_check_branch
          %405 = sbr.rel (%p403) target = $region52
        $region51: #{tpu_custom_call.1} parent=47 // pred_region
          %s406 = sand.u32 %s71, 1
          %s407 = scalar_lea.sflag [#allocation5], %s406
          %s408 = sand.u32 %s71, 1
          %s409 = smul.addr %s408, 8
          %s410 = scalar_lea.vmem [#allocation6], %s409
          %411 = dma.done %s407, 128
        $region52: #{tpu_custom_call.1} parent=47 // pred_fallthru
          _
      $region48: #{tpu_custom_call.1} parent=5 // pred_fallthru
        _
    $region6: #{tpu_custom_call.1} parent=1 // loop_footer
      %s17 = sadd.s32 1, %s13
    $region7: #{tpu_custom_call.1} parent=1 // loop_footer_branch
      %12 = sbr.rel target = $region3
    $region8: #{tpu_custom_call.1} parent=1 // loop_exit
      _
    %412 = vsyncpa [#allocation4], 1
    %s413 = scalar_lea.sflag [#allocation4], 1
    %414 = vsyncpa %s413, 1
    %415 = vsyncpa [#allocation5], 1
    %s416 = scalar_lea.sflag [#allocation5], 1
    %417 = vsyncpa %s416, 1

</llo_original>
